<compile_context>
chip_gen: v7x
topology: tpu7x:2x2x1
jax: 0.10.0
libtpu: 0.0.40
codegen_flags: <defaults>
</compile_context>

<pallas_src>
import jax
import jax.numpy as jnp
from jax.experimental import pallas as pl
from jax.experimental.pallas import tpu as pltpu

LANE = 128          # vreg lane width (last dim)
BF16_SUBLANE = 16   # bf16 packs 16 rows per vreg -> keep batch tiles %16 == 0


def _round_up(x, m):
    return ((x + m - 1) // m) * m


def _cdiv(a, b):
    return -(-a // b)


# ---------------------------------------------------------------------------
# Kernel
# ---------------------------------------------------------------------------
def mlp_actor_kernel(limit_ref,
                     x_ref, w1_ref, b1_ref, w2_ref, b2_ref, w3_ref, b3_ref,
                     o_ref):
    """One batch tile of the fused 3-layer MLP.

    x_ref is a bf16 obs tile; weights are VMEM-resident bf16 (single-buffered);
    matmuls accumulate in f32 on the MXU; bias/ReLU/tanh/scale run in f32 on
    the VPU/EUP (do NOT push these to bf16: v5e's VPU/EUP has no bf16 support).
    """
    # Layer 1: Linear (bf16 MXU, f32 accumulate) + bias + ReLU.
    h = jnp.dot(x_ref[...], w1_ref[...], preferred_element_type=jnp.float32)
    h = jnp.maximum(h + b1_ref[...], 0.0)
    # Layer 2.
    h = jnp.dot(h.astype(jnp.bfloat16), w2_ref[...],
                preferred_element_type=jnp.float32)
    h = jnp.maximum(h + b2_ref[...], 0.0)
    # Output layer: Linear + Tanh, scaled by act_limit (SMEM scalar).
    y = jnp.dot(h.astype(jnp.bfloat16), w3_ref[...],
                preferred_element_type=jnp.float32)
    y = jnp.tanh(y + b3_ref[...])
    o_ref[...] = (limit_ref[0, 0] * y).astype(o_ref.dtype)


# ---------------------------------------------------------------------------
# One-time parameter preparation (pad to lane multiples + cast to bf16)
# ---------------------------------------------------------------------------
def prepare_params(params):
    """Pad weights to 128-lane multiples and cast to bf16, ONCE.

    params: (w1, b1, w2, b2, w3, b3) with w_j stored as [in, out] and b_j as
    [1, out] (transposed w.r.t. torch.nn.Linear). Call this after parameter
    updates, not per forward call — it is a full weight-sized HBM round trip.
    """
    w1, b1, w2, b2, w3, b3 = params
    obs_dim, h1 = w1.shape
    h2 = w2.shape[1]
    act_dim = w3.shape[1]
    d_in, d_h1 = _round_up(obs_dim, LANE), _round_up(h1, LANE)
    d_h2, d_out = _round_up(h2, LANE), _round_up(act_dim, LANE)

    def pad_w(w, rows, cols):
        return jnp.pad(w, ((0, rows - w.shape[0]), (0, cols - w.shape[1]))
                       ).astype(jnp.bfloat16)

    def pad_b(b, cols):
        return jnp.pad(b, ((0, 0), (0, cols - b.shape[1]))).astype(jnp.float32)

    return dict(
        w1=pad_w(w1, d_in, d_h1), b1=pad_b(b1, d_h1),
        w2=pad_w(w2, d_h1, d_h2), b2=pad_b(b2, d_h2),
        w3=pad_w(w3, d_h2, d_out), b3=pad_b(b3, d_out),
        dims=(obs_dim, act_dim),
        padded_dims=(d_in, d_h1, d_h2, d_out),
    )


# ---------------------------------------------------------------------------
# Batch tiling + VMEM budget
# ---------------------------------------------------------------------------
def _pick_batch_tiling(B, batch_tile):
    """Tile is a multiple of 16 (bf16 sublane packing); >=2 grid steps when
    B >= 32 (keeps both v7x TensorCores busy with "parallel" semantics);
    padding waste is bounded to <16 rows per tile."""
    bp16 = _round_up(B, BF16_SUBLANE)
    cap = max(BF16_SUBLANE, min(batch_tile, bp16))
    n_tiles = _cdiv(bp16, cap)
    if bp16 >= 2 * BF16_SUBLANE:
        n_tiles = max(n_tiles, 2)
    tile = _round_up(_cdiv(bp16, n_tiles), BF16_SUBLANE)
    return tile, n_tiles * tile, n_tiles


def _vmem_limit_bytes(tile, d_in, d_h1, d_h2, d_out):
    w = 2 * (d_in * d_h1 + d_h1 * d_h2 + d_h2 * d_out)       # bf16 weights, 1 buffer
    b = 4 * (d_h1 + d_h2 + d_out)                            # f32 biases, 1 buffer
    io = 2 * (tile * d_in * 2) + 2 * (tile * d_out * 4)      # double-buffered obs/out
    act = tile * (4 * (d_h1 + d_h2 + d_out) + 2 * (d_h1 + d_h2))  # f32 acts + bf16 casts
    est = int(1.25 * (w + b + io + act))                     # ~25% headroom
    return int(min(max(est, 32 * 2 ** 20), 128 * 2 ** 20))


# ---------------------------------------------------------------------------
# Forward
# ---------------------------------------------------------------------------
def mlp_actor_forward(obs, prepared, act_limit, *, batch_tile=512):
    """obs [B, obs_dim] (f32) -> actions [B, act_dim] (f32).

    prepared: output of prepare_params(params).
    """
    B, obs_dim = obs.shape
    p_obs_dim, act_dim = prepared["dims"]
    assert obs_dim == p_obs_dim, "obs_dim mismatch with prepared params"
    d_in, d_h1, d_h2, d_out = prepared["padded_dims"]

    tile, Bp, n_tiles = _pick_batch_tiling(B, batch_tile)

    # Ship obs to the kernel already as padded bf16 (halves the input stream).
    obs_p = jnp.pad(obs, ((0, Bp - B), (0, d_in - obs_dim))).astype(jnp.bfloat16)
    limit = jnp.asarray(act_limit, jnp.float32).reshape(1, 1)

    vmem_limit = _vmem_limit_bytes(tile, d_in, d_h1, d_h2, d_out)
    # TODO(synk): on v7x (64 MiB VMEM) hidden sizes >= 4096 would need the
    # hidden dim split across a second grid axis instead of resident weights.

    def _call(single_buffer_weights):
        if single_buffer_weights:
            resident = lambda shape: pl.BlockSpec(
                shape, lambda i: (0, 0), pipeline_mode=pl.Buffered(1))
        else:
            resident = lambda shape: pl.BlockSpec(shape, lambda i: (0, 0))
        return pl.pallas_call(
            mlp_actor_kernel,
            out_shape=jax.ShapeDtypeStruct((Bp, d_out), jnp.float32),
            grid=(n_tiles,),
            in_specs=[
                pl.BlockSpec(memory_space=pltpu.MemorySpace.SMEM),   # act_limit
                pl.BlockSpec((tile, d_in), lambda i: (i, 0)),        # obs tile
                resident((d_in, d_h1)), resident((1, d_h1)),         # w1, b1
                resident((d_h1, d_h2)), resident((1, d_h2)),         # w2, b2
                resident((d_h2, d_out)), resident((1, d_out)),       # w3, b3
            ],
            out_specs=pl.BlockSpec((tile, d_out), lambda i: (i, 0)),
            compiler_params=pltpu.CompilerParams(
                dimension_semantics=("parallel",),    # shard tiles on v7x dual-TC
                vmem_limit_bytes=vmem_limit),
        )(limit, obs_p, prepared["w1"], prepared["b1"],
          prepared["w2"], prepared["b2"], prepared["w3"], prepared["b3"])

    try:
        out_p = _call(single_buffer_weights=True)
    except Exception:
        # pl.Buffered(1) not accepted on this jax version -> default buffering.
        out_p = _call(single_buffer_weights=False)

    return out_p[:B, :act_dim]


# ---------------------------------------------------------------------------
# Init + references
# ---------------------------------------------------------------------------
def init_params(key, obs_dim, hidden_sizes, act_dim):
    """PyTorch-Linear-style init (uniform +-1/sqrt(fan_in)).
    Weights stored as [in, out] (transposed w.r.t. torch.nn.Linear)."""
    sizes = [obs_dim] + list(hidden_sizes) + [act_dim]
    params = []
    for j in range(len(sizes) - 1):
        fan_in, fan_out = sizes[j], sizes[j + 1]
        key, kw, kb = jax.random.split(key, 3)
        bound = 1.0 / jnp.sqrt(fan_in)
        w = jax.random.uniform(kw, (fan_in, fan_out), jnp.float32,
                               minval=-bound, maxval=bound)
        b = jax.random.uniform(kb, (1, fan_out), jnp.float32,
                               minval=-bound, maxval=bound)
        params += [w, b]
    return tuple(params)


def reference_forward_f32(obs, params, act_limit):
    """Pure-JAX f32 reference (exact PyTorch semantics)."""
    w1, b1, w2, b2, w3, b3 = params
    h = jnp.maximum(obs @ w1 + b1, 0.0)
    h = jnp.maximum(h @ w2 + b2, 0.0)
    return act_limit * jnp.tanh(h @ w3 + b3)


def reference_forward_bf16(obs, params, act_limit):
    """Pure-JAX reference with the same bf16-input / f32-accumulate matmuls."""
    w1, b1, w2, b2, w3, b3 = params
    bf = jnp.bfloat16
    h = jnp.dot(obs.astype(bf), w1.astype(bf),
                preferred_element_type=jnp.float32) + b1
    h = jnp.maximum(h, 0.0)
    h = jnp.dot(h.astype(bf), w2.astype(bf),
                preferred_element_type=jnp.float32) + b2
    h = jnp.maximum(h, 0.0)
    y = jnp.dot(h.astype(bf), w3.astype(bf),
                preferred_element_type=jnp.float32) + b3
    return act_limit * jnp.tanh(y)


if __name__ == "__main__":
    # Small shapes consistent with the module's forward.
    batch = 4
    obs_dim = 16
    hidden_sizes = (32, 32)
    act_dim = 8
    act_limit = 2.0

    key = jax.random.PRNGKey(0)
    key, k_obs = jax.random.split(key)
    obs = jax.random.normal(k_obs, (batch, obs_dim), jnp.float32)
    params = init_params(key, obs_dim, hidden_sizes, act_dim)
    prepared = prepare_params(params)    # one-time pad + bf16 cast

    out = jax.block_until_ready(mlp_actor_forward(obs, prepared, act_limit))
    assert out.shape == (batch, act_dim)

    # Tight check vs a JAX reference using the same bf16/f32 mixed precision.
    ref_bf16 = reference_forward_bf16(obs, params, act_limit)
    assert jnp.allclose(out, ref_bf16, atol=2e-3, rtol=2e-3), \
        "mismatch vs bf16-consistent reference"
    # Loose check vs the full-f32 PyTorch-equivalent reference (bf16 MXU path
    # is a deliberate precision/perf tradeoff for the DDPG actor).
    ref_f32 = reference_forward_f32(obs, params, act_limit)
    assert jnp.allclose(out, ref_f32, atol=5e-2, rtol=5e-2), \
        "mismatch vs f32 reference"

    # Second case with a ragged batch to exercise the >=2-tile grid path
    # (v7x dual-TC sharding) and the bounded batch-padding logic.
    obs2 = jax.random.normal(jax.random.PRNGKey(1), (37, obs_dim), jnp.float32)
    out2 = jax.block_until_ready(mlp_actor_forward(obs2, prepared, act_limit))
    assert out2.shape == (37, act_dim)
    assert jnp.allclose(out2, reference_forward_bf16(obs2, params, act_limit),
                        atol=2e-3, rtol=2e-3), "mismatch on ragged batch"

    print("KERNEL_OK")
</pallas_src>

<mosaic_0001>
module attributes {stable_mosaic.version = 11 : i64} {
  func.func @mlp_actor_kernel(%arg0: i32, %arg1: memref<1x1xf32, #tpu.memory_space<smem>>, %arg2: memref<16x128xbf16, #tpu.memory_space<vmem>>, %arg3: memref<128x128xbf16, #tpu.memory_space<vmem>>, %arg4: memref<1x128xf32, #tpu.memory_space<vmem>>, %arg5: memref<128x128xbf16, #tpu.memory_space<vmem>>, %arg6: memref<1x128xf32, #tpu.memory_space<vmem>>, %arg7: memref<128x128xbf16, #tpu.memory_space<vmem>>, %arg8: memref<1x128xf32, #tpu.memory_space<vmem>>, %arg9: memref<16x128xf32, #tpu.memory_space<vmem>>) attributes {dimension_semantics = [#tpu.dimension_semantics<parallel>], iteration_bounds = array<i64: 1>, scalar_prefetch = 0 : i64, scratch_operands = 0 : i64, tpu.core_type = #tpu.core_type<tc>, window_params = [{transform_indices = @transform_0, window_bounds = array<i64: 1, 1>}, {transform_indices = @transform_1, window_bounds = array<i64: 16, 128>}, {pipeline_mode = #tpu.pipeline_mode<synchronous>, transform_indices = @transform_2, window_bounds = array<i64: 128, 128>}, {pipeline_mode = #tpu.pipeline_mode<synchronous>, transform_indices = @transform_3, window_bounds = array<i64: 1, 128>}, {pipeline_mode = #tpu.pipeline_mode<synchronous>, transform_indices = @transform_4, window_bounds = array<i64: 128, 128>}, {pipeline_mode = #tpu.pipeline_mode<synchronous>, transform_indices = @transform_5, window_bounds = array<i64: 1, 128>}, {pipeline_mode = #tpu.pipeline_mode<synchronous>, transform_indices = @transform_6, window_bounds = array<i64: 128, 128>}, {pipeline_mode = #tpu.pipeline_mode<synchronous>, transform_indices = @transform_7, window_bounds = array<i64: 1, 128>}, {transform_indices = @transform_8, window_bounds = array<i64: 16, 128>}]} {
    %c0 = arith.constant 0 : index
    %c0_0 = arith.constant 0 : index
    %0 = vector.load %arg2[%c0, %c0_0] : memref<16x128xbf16, #tpu.memory_space<vmem>>, vector<16x128xbf16>
    %c0_1 = arith.constant 0 : index
    %c0_2 = arith.constant 0 : index
    %1 = vector.load %arg3[%c0_1, %c0_2] : memref<128x128xbf16, #tpu.memory_space<vmem>>, vector<128x128xbf16>
    %cst = arith.constant dense<0.000000e+00> : vector<16x128xf32>
    %2 = tpu.matmul %0, %1, %cst {dimension_numbers = #tpu.dot_dimension_numbers<[1], [0], [0], [1], [0, 0, 1, 1], [], []>} : vector<16x128xbf16>, vector<128x128xbf16>, vector<16x128xf32> -> vector<16x128xf32>
    %c0_3 = arith.constant 0 : index
    %c0_4 = arith.constant 0 : index
    %3 = vector.load %arg4[%c0_3, %c0_4] : memref<1x128xf32, #tpu.memory_space<vmem>>, vector<1x128xf32>
    %4 = vector.broadcast %3 : vector<1x128xf32> to vector<16x128xf32>
    %5 = arith.addf %2, %4 : vector<16x128xf32>
    %cst_5 = arith.constant 0.000000e+00 : f32
    %6 = vector.broadcast %cst_5 : f32 to vector<16x128xf32>
    %7 = arith.maximumf %5, %6 : vector<16x128xf32>
    %8 = arith.truncf %7 : vector<16x128xf32> to vector<16x128xbf16>
    %c0_6 = arith.constant 0 : index
    %c0_7 = arith.constant 0 : index
    %9 = vector.load %arg5[%c0_6, %c0_7] : memref<128x128xbf16, #tpu.memory_space<vmem>>, vector<128x128xbf16>
    %cst_8 = arith.constant dense<0.000000e+00> : vector<16x128xf32>
    %10 = tpu.matmul %8, %9, %cst_8 {dimension_numbers = #tpu.dot_dimension_numbers<[1], [0], [0], [1], [0, 0, 1, 1], [], []>} : vector<16x128xbf16>, vector<128x128xbf16>, vector<16x128xf32> -> vector<16x128xf32>
    %c0_9 = arith.constant 0 : index
    %c0_10 = arith.constant 0 : index
    %11 = vector.load %arg6[%c0_9, %c0_10] : memref<1x128xf32, #tpu.memory_space<vmem>>, vector<1x128xf32>
    %12 = vector.broadcast %11 : vector<1x128xf32> to vector<16x128xf32>
    %13 = arith.addf %10, %12 : vector<16x128xf32>
    %cst_11 = arith.constant 0.000000e+00 : f32
    %14 = vector.broadcast %cst_11 : f32 to vector<16x128xf32>
    %15 = arith.maximumf %13, %14 : vector<16x128xf32>
    %16 = arith.truncf %15 : vector<16x128xf32> to vector<16x128xbf16>
    %c0_12 = arith.constant 0 : index
    %c0_13 = arith.constant 0 : index
    %17 = vector.load %arg7[%c0_12, %c0_13] : memref<128x128xbf16, #tpu.memory_space<vmem>>, vector<128x128xbf16>
    %cst_14 = arith.constant dense<0.000000e+00> : vector<16x128xf32>
    %18 = tpu.matmul %16, %17, %cst_14 {dimension_numbers = #tpu.dot_dimension_numbers<[1], [0], [0], [1], [0, 0, 1, 1], [], []>} : vector<16x128xbf16>, vector<128x128xbf16>, vector<16x128xf32> -> vector<16x128xf32>
    %c0_15 = arith.constant 0 : index
    %c0_16 = arith.constant 0 : index
    %19 = vector.load %arg8[%c0_15, %c0_16] : memref<1x128xf32, #tpu.memory_space<vmem>>, vector<1x128xf32>
    %20 = vector.broadcast %19 : vector<1x128xf32> to vector<16x128xf32>
    %21 = arith.addf %18, %20 : vector<16x128xf32>
    %22 = math.tanh %21 : vector<16x128xf32>
    %c0_17 = arith.constant 0 : index
    %c0_18 = arith.constant 0 : index
    %23 = memref.load %arg1[%c0_17, %c0_18] : memref<1x1xf32, #tpu.memory_space<smem>>
    %24 = vector.broadcast %23 : f32 to vector<16x128xf32>
    %25 = arith.mulf %24, %22 : vector<16x128xf32>
    %c0_19 = arith.constant 0 : index
    %c0_20 = arith.constant 0 : index
    %26 = vector.load %arg9[%c0_19, %c0_20] : memref<16x128xf32, #tpu.memory_space<vmem>>, vector<16x128xf32>
    tpu.vector_store %arg9[%c0_19, %c0_20], %25 {strides = array<i32>} : memref<16x128xf32, #tpu.memory_space<vmem>>, vector<16x128xf32>,
    return
  }
  func.func @transform_0(%arg0: i32) -> (i32, i32) {
    %c0_i32 = arith.constant 0 : i32
    %c0_i32_0 = arith.constant 0 : i32
    %c0_i32_1 = arith.constant 0 : i32
    return %c0_i32, %c0_i32_0 : i32, i32
  }
  func.func @transform_1(%arg0: i32) -> (i32, i32) {
    %c0_i32 = arith.constant 0 : i32
    %c0_i32_0 = arith.constant 0 : i32
    return %arg0, %c0_i32 : i32, i32
  }
  func.func @transform_2(%arg0: i32) -> (i32, i32) {
    %c0_i32 = arith.constant 0 : i32
    %c0_i32_0 = arith.constant 0 : i32
    %c0_i32_1 = arith.constant 0 : i32
    return %c0_i32, %c0_i32_0 : i32, i32
  }
  func.func @transform_3(%arg0: i32) -> (i32, i32) {
    %c0_i32 = arith.constant 0 : i32
    %c0_i32_0 = arith.constant 0 : i32
    %c0_i32_1 = arith.constant 0 : i32
    return %c0_i32, %c0_i32_0 : i32, i32
  }
  func.func @transform_4(%arg0: i32) -> (i32, i32) {
    %c0_i32 = arith.constant 0 : i32
    %c0_i32_0 = arith.constant 0 : i32
    %c0_i32_1 = arith.constant 0 : i32
    return %c0_i32, %c0_i32_0 : i32, i32
  }
  func.func @transform_5(%arg0: i32) -> (i32, i32) {
    %c0_i32 = arith.constant 0 : i32
    %c0_i32_0 = arith.constant 0 : i32
    %c0_i32_1 = arith.constant 0 : i32
    return %c0_i32, %c0_i32_0 : i32, i32
  }
  func.func @transform_6(%arg0: i32) -> (i32, i32) {
    %c0_i32 = arith.constant 0 : i32
    %c0_i32_0 = arith.constant 0 : i32
    %c0_i32_1 = arith.constant 0 : i32
    return %c0_i32, %c0_i32_0 : i32, i32
  }
  func.func @transform_7(%arg0: i32) -> (i32, i32) {
    %c0_i32 = arith.constant 0 : i32
    %c0_i32_0 = arith.constant 0 : i32
    %c0_i32_1 = arith.constant 0 : i32
    return %c0_i32, %c0_i32_0 : i32, i32
  }
  func.func @transform_8(%arg0: i32) -> (i32, i32) {
    %c0_i32 = arith.constant 0 : i32
    %c0_i32_0 = arith.constant 0 : i32
    return %arg0, %c0_i32 : i32, i32
  }
}

module attributes {stable_mosaic.version = 11 : i64} {
  func.func @mlp_actor_kernel(%arg0: i32, %arg1: memref<1x1xf32, #tpu.memory_space<smem>>, %arg2: memref<16x128xbf16, #tpu.memory_space<vmem>>, %arg3: memref<128x128xbf16, #tpu.memory_space<vmem>>, %arg4: memref<1x128xf32, #tpu.memory_space<vmem>>, %arg5: memref<128x128xbf16, #tpu.memory_space<vmem>>, %arg6: memref<1x128xf32, #tpu.memory_space<vmem>>, %arg7: memref<128x128xbf16, #tpu.memory_space<vmem>>, %arg8: memref<1x128xf32, #tpu.memory_space<vmem>>, %arg9: memref<16x128xf32, #tpu.memory_space<vmem>>) attributes {dimension_semantics = [#tpu.dimension_semantics<parallel>], iteration_bounds = array<i64: 1>, scalar_prefetch = 0 : i64, scratch_operands = 0 : i64, tpu.core_type = #tpu.core_type<tc>, window_params = [{transform_indices = @transform_0, window_bounds = array<i64: 1, 1>}, {transform_indices = @transform_1, window_bounds = array<i64: 16, 128>}, {pipeline_mode = #tpu.pipeline_mode<synchronous>, transform_indices = @transform_2, window_bounds = array<i64: 128, 128>}, {pipeline_mode = #tpu.pipeline_mode<synchronous>, transform_indices = @transform_3, window_bounds = array<i64: 1, 128>}, {pipeline_mode = #tpu.pipeline_mode<synchronous>, transform_indices = @transform_4, window_bounds = array<i64: 128, 128>}, {pipeline_mode = #tpu.pipeline_mode<synchronous>, transform_indices = @transform_5, window_bounds = array<i64: 1, 128>}, {pipeline_mode = #tpu.pipeline_mode<synchronous>, transform_indices = @transform_6, window_bounds = array<i64: 128, 128>}, {pipeline_mode = #tpu.pipeline_mode<synchronous>, transform_indices = @transform_7, window_bounds = array<i64: 1, 128>}, {transform_indices = @transform_8, window_bounds = array<i64: 16, 128>}]} {
    %c0 = arith.constant 0 : index
    %c0_0 = arith.constant 0 : index
    %0 = vector.load %arg2[%c0, %c0_0] : memref<16x128xbf16, #tpu.memory_space<vmem>>, vector<16x128xbf16>
    %c0_1 = arith.constant 0 : index
    %c0_2 = arith.constant 0 : index
    %1 = vector.load %arg3[%c0_1, %c0_2] : memref<128x128xbf16, #tpu.memory_space<vmem>>, vector<128x128xbf16>
    %cst = arith.constant dense<0.000000e+00> : vector<16x128xf32>
    %2 = tpu.matmul %0, %1, %cst {dimension_numbers = #tpu.dot_dimension_numbers<[1], [0], [0], [1], [0, 0, 1, 1], [], []>} : vector<16x128xbf16>, vector<128x128xbf16>, vector<16x128xf32> -> vector<16x128xf32>
    %c0_3 = arith.constant 0 : index
    %c0_4 = arith.constant 0 : index
    %3 = vector.load %arg4[%c0_3, %c0_4] : memref<1x128xf32, #tpu.memory_space<vmem>>, vector<1x128xf32>
    %4 = vector.broadcast %3 : vector<1x128xf32> to vector<16x128xf32>
    %5 = arith.addf %2, %4 : vector<16x128xf32>
    %cst_5 = arith.constant 0.000000e+00 : f32
    %6 = vector.broadcast %cst_5 : f32 to vector<16x128xf32>
    %7 = arith.maximumf %5, %6 : vector<16x128xf32>
    %8 = arith.truncf %7 : vector<16x128xf32> to vector<16x128xbf16>
    %c0_6 = arith.constant 0 : index
    %c0_7 = arith.constant 0 : index
    %9 = vector.load %arg5[%c0_6, %c0_7] : memref<128x128xbf16, #tpu.memory_space<vmem>>, vector<128x128xbf16>
    %cst_8 = arith.constant dense<0.000000e+00> : vector<16x128xf32>
    %10 = tpu.matmul %8, %9, %cst_8 {dimension_numbers = #tpu.dot_dimension_numbers<[1], [0], [0], [1], [0, 0, 1, 1], [], []>} : vector<16x128xbf16>, vector<128x128xbf16>, vector<16x128xf32> -> vector<16x128xf32>
    %c0_9 = arith.constant 0 : index
    %c0_10 = arith.constant 0 : index
    %11 = vector.load %arg6[%c0_9, %c0_10] : memref<1x128xf32, #tpu.memory_space<vmem>>, vector<1x128xf32>
    %12 = vector.broadcast %11 : vector<1x128xf32> to vector<16x128xf32>
    %13 = arith.addf %10, %12 : vector<16x128xf32>
    %cst_11 = arith.constant 0.000000e+00 : f32
    %14 = vector.broadcast %cst_11 : f32 to vector<16x128xf32>
    %15 = arith.maximumf %13, %14 : vector<16x128xf32>
    %16 = arith.truncf %15 : vector<16x128xf32> to vector<16x128xbf16>
    %c0_12 = arith.constant 0 : index
    %c0_13 = arith.constant 0 : index
    %17 = vector.load %arg7[%c0_12, %c0_13] : memref<128x128xbf16, #tpu.memory_space<vmem>>, vector<128x128xbf16>
    %cst_14 = arith.constant dense<0.000000e+00> : vector<16x128xf32>
    %18 = tpu.matmul %16, %17, %cst_14 {dimension_numbers = #tpu.dot_dimension_numbers<[1], [0], [0], [1], [0, 0, 1, 1], [], []>} : vector<16x128xbf16>, vector<128x128xbf16>, vector<16x128xf32> -> vector<16x128xf32>
    %c0_15 = arith.constant 0 : index
    %c0_16 = arith.constant 0 : index
    %19 = vector.load %arg8[%c0_15, %c0_16] : memref<1x128xf32, #tpu.memory_space<vmem>>, vector<1x128xf32>
    %20 = vector.broadcast %19 : vector<1x128xf32> to vector<16x128xf32>
    %21 = arith.addf %18, %20 : vector<16x128xf32>
    %22 = math.tanh %21 : vector<16x128xf32>
    %c0_17 = arith.constant 0 : index
    %c0_18 = arith.constant 0 : index
    %23 = memref.load %arg1[%c0_17, %c0_18] : memref<1x1xf32, #tpu.memory_space<smem>>
    %24 = vector.broadcast %23 : f32 to vector<16x128xf32>
    %25 = arith.mulf %24, %22 : vector<16x128xf32>
    %c0_19 = arith.constant 0 : index
    %c0_20 = arith.constant 0 : index
    %26 = vector.load %arg9[%c0_19, %c0_20] : memref<16x128xf32, #tpu.memory_space<vmem>>, vector<16x128xf32>
    tpu.vector_store %arg9[%c0_19, %c0_20], %25 {strides = array<i32>} : memref<16x128xf32, #tpu.memory_space<vmem>>, vector<16x128xf32>,
    return
  }
  func.func @transform_0(%arg0: i32) -> (i32, i32) {
    %c0_i32 = arith.constant 0 : i32
    %c0_i32_0 = arith.constant 0 : i32
    %c0_i32_1 = arith.constant 0 : i32
    return %c0_i32, %c0_i32_0 : i32, i32
  }
  func.func @transform_1(%arg0: i32) -> (i32, i32) {
    %c0_i32 = arith.constant 0 : i32
    %c0_i32_0 = arith.constant 0 : i32
    return %arg0, %c0_i32 : i32, i32
  }
  func.func @transform_2(%arg0: i32) -> (i32, i32) {
    %c0_i32 = arith.constant 0 : i32
    %c0_i32_0 = arith.constant 0 : i32
    %c0_i32_1 = arith.constant 0 : i32
    return %c0_i32, %c0_i32_0 : i32, i32
  }
  func.func @transform_3(%arg0: i32) -> (i32, i32) {
    %c0_i32 = arith.constant 0 : i32
    %c0_i32_0 = arith.constant 0 : i32
    %c0_i32_1 = arith.constant 0 : i32
    return %c0_i32, %c0_i32_0 : i32, i32
  }
  func.func @transform_4(%arg0: i32) -> (i32, i32) {
    %c0_i32 = arith.constant 0 : i32
    %c0_i32_0 = arith.constant 0 : i32
    %c0_i32_1 = arith.constant 0 : i32
    return %c0_i32, %c0_i32_0 : i32, i32
  }
  func.func @transform_5(%arg0: i32) -> (i32, i32) {
    %c0_i32 = arith.constant 0 : i32
    %c0_i32_0 = arith.constant 0 : i32
    %c0_i32_1 = arith.constant 0 : i32
    return %c0_i32, %c0_i32_0 : i32, i32
  }
  func.func @transform_6(%arg0: i32) -> (i32, i32) {
    %c0_i32 = arith.constant 0 : i32
    %c0_i32_0 = arith.constant 0 : i32
    %c0_i32_1 = arith.constant 0 : i32
    return %c0_i32, %c0_i32_0 : i32, i32
  }
  func.func @transform_7(%arg0: i32) -> (i32, i32) {
    %c0_i32 = arith.constant 0 : i32
    %c0_i32_0 = arith.constant 0 : i32
    %c0_i32_1 = arith.constant 0 : i32
    return %c0_i32, %c0_i32_0 : i32, i32
  }
  func.func @transform_8(%arg0: i32) -> (i32, i32) {
    %c0_i32 = arith.constant 0 : i32
    %c0_i32_0 = arith.constant 0 : i32
    return %arg0, %c0_i32 : i32, i32
  }
}

</mosaic_0001>

<llo_original>
// kernel: tpu_custom_call.1
$region0: #{tpu_custom_call.1}
  #allocation0 [shape = 'u32[]', space=smem, size = 0x4, offset = 0x4, fixed_abs, tag = 'smem constant byte address 0x4 - core index']
  #allocation1 [shape = 'u32[144,128]{1,0:T(1,128)}', space=vmem, size = 0x12000, scoped, tag = 'internal scratch']
  #allocation2 [shape = 'f32[1,1]{1,0:T(1,128)S(6)}', space=smem, size = 0x200, scoped, tag = 'scoped memory for tpu_custom_call.1']
  %s0 = inlined_call_operand.<no memory space> [shape: f32[1,1], index: 0, kind: input, shape index: {}]
  %s1 = inlined_call_operand.hbm [shape: bf16[16,128], index: 1, kind: input, shape index: {}]
  %s2 = inlined_call_operand.hbm [shape: bf16[128,128], index: 2, kind: input, shape index: {}]
  %s3 = inlined_call_operand.vmem [shape: f32[1,128], index: 3, kind: input, shape index: {}]
  %s4 = inlined_call_operand.hbm [shape: bf16[128,128], index: 4, kind: input, shape index: {}]
  %s5 = inlined_call_operand.vmem [shape: f32[1,128], index: 5, kind: input, shape index: {}]
  %s6 = inlined_call_operand.hbm [shape: bf16[128,128], index: 6, kind: input, shape index: {}]
  %s7 = inlined_call_operand.vmem [shape: f32[1,128], index: 7, kind: input, shape index: {}]
  %s8 = inlined_call_operand.hbm [shape: f32[16,128], index: 8, kind: output, shape index: {}]
  %s9 = sld [smem:[#allocation0]]
  $region58: #{tpu_custom_call.1} parent=0
    _
  %s11 = ssub.s32 1, %s9
  %s12 = scalar_select 0, %s11, %s9
  %13 = sst [smem:[#allocation2]] %s0
  $region1: #{tpu_custom_call.1} parent=0
    #allocation3 [shape = 'u8[4096]{0}', space=vmem, size = 0x1000, scoped, tag = 'input window, operand 1, single buffered']
    #allocation4 [shape = 's32[1]{0}', space=sflag, size = 0x4, scoped, tag = 'scoped memory for tpu_custom_call.1']
    #allocation5 [shape = 's32[1]{0}', space=sflag, size = 0x4, scoped, tag = 'scoped memory for tpu_custom_call.1']
    #allocation6 [shape = 'u8[32768]{0}', space=vmem, size = 0x8000, scoped, tag = 'input window, operand 2, single buffered']
    #allocation7 [shape = 's32[1]{0}', space=sflag, size = 0x4, scoped, tag = 'scoped memory for tpu_custom_call.1']
    #allocation8 [shape = 'u8[32768]{0}', space=vmem, size = 0x8000, scoped, tag = 'input window, operand 4, single buffered']
    #allocation9 [shape = 'u8[32768]{0}', space=vmem, size = 0x8000, scoped, tag = 'input window, operand 6, single buffered']
    #allocation10 [shape = 's32[1]{0}', space=sflag, size = 0x4, scoped, tag = 'scoped memory for tpu_custom_call.1']
    #allocation11 [shape = 'u8[8192]{0}', space=vmem, size = 0x2000, scoped, tag = 'output window, operand 0, single buffered']
    %14 = vsyncpa [#allocation4], 0
    %15 = vsyncpa [#allocation7], 0
    %16 = vsyncpa [#allocation10], 0
    %17 = vsyncpa [#allocation5], 0
    // Predicated region
    $region2: #{tpu_custom_call.1} parent=1 // pred_check
      _
    $region3: #{tpu_custom_call.1} parent=1 // pred_check_branch
      %19 = sbr.rel (0) target = $region5
    $region4: #{tpu_custom_call.1} parent=1 // pred_region
      _
    $region5: #{tpu_custom_call.1} parent=1 // pred_fallthru
      _
    // Predicated region
    $region6: #{tpu_custom_call.1} parent=1 // pred_check
      _
    $region7: #{tpu_custom_call.1} parent=1 // pred_check_branch
      %21 = sbr.rel (0) target = $region9
    $region8: #{tpu_custom_call.1} parent=1 // pred_region
      %s23 = ssub.s32 128, 128
      %24 = vsyncadd [#allocation4], %s23
      %s25 = sshll.u32 [#allocation3], 4
      %s26 = int_to_ptr.vmem [resolvable:$true] %s25
      %31 = dma.hbm_to_vmem [thread:$0]  %s1, 128, %s26, [#allocation4], 64, 64, 4
    $region9: #{tpu_custom_call.1} parent=1 // pred_fallthru
      _
    // Predicated region
    $region10: #{tpu_custom_call.1} parent=1 // pred_check
      _
    $region11: #{tpu_custom_call.1} parent=1 // pred_check_branch
      %33 = sbr.rel (0) target = $region13
    $region12: #{tpu_custom_call.1} parent=1 // pred_region
      %s35 = ssub.s32 1024, 1024
      %36 = vsyncadd [#allocation7], %s35
      %s37 = sshll.u32 [#allocation6], 4
      %s38 = int_to_ptr.vmem [resolvable:$true] %s37
      %43 = dma.hbm_to_vmem [thread:$0]  %s2, 1024, %s38, [#allocation7], 64, 64, 4
    $region13: #{tpu_custom_call.1} parent=1 // pred_fallthru
      _
    // Predicated region
    $region14: #{tpu_custom_call.1} parent=1 // pred_check
      _
    $region15: #{tpu_custom_call.1} parent=1 // pred_check_branch
      %45 = sbr.rel (0) target = $region17
    $region16: #{tpu_custom_call.1} parent=1 // pred_region
      _
    $region17: #{tpu_custom_call.1} parent=1 // pred_fallthru
      _
    // Predicated region
    $region18: #{tpu_custom_call.1} parent=1 // pred_check
      _
    $region19: #{tpu_custom_call.1} parent=1 // pred_check_branch
      %47 = sbr.rel (0) target = $region21
    $region20: #{tpu_custom_call.1} parent=1 // pred_region
      %s49 = ssub.s32 1024, 1024
      %50 = vsyncadd [#allocation7], %s49
      %s51 = sshll.u32 [#allocation8], 4
      %s52 = int_to_ptr.vmem [resolvable:$true] %s51
      %57 = dma.hbm_to_vmem [thread:$0]  %s4, 1024, %s52, [#allocation7], 64, 64, 4
    $region21: #{tpu_custom_call.1} parent=1 // pred_fallthru
      _
    // Predicated region
    $region22: #{tpu_custom_call.1} parent=1 // pred_check
      _
    $region23: #{tpu_custom_call.1} parent=1 // pred_check_branch
      %59 = sbr.rel (0) target = $region25
    $region24: #{tpu_custom_call.1} parent=1 // pred_region
      _
    $region25: #{tpu_custom_call.1} parent=1 // pred_fallthru
      _
    // Predicated region
    $region26: #{tpu_custom_call.1} parent=1 // pred_check
      _
    $region27: #{tpu_custom_call.1} parent=1 // pred_check_branch
      %61 = sbr.rel (0) target = $region29
    $region28: #{tpu_custom_call.1} parent=1 // pred_region
      %s63 = ssub.s32 1024, 1024
      %64 = vsyncadd [#allocation10], %s63
      %s65 = sshll.u32 [#allocation9], 4
      %s66 = int_to_ptr.vmem [resolvable:$true] %s65
      %71 = dma.hbm_to_vmem [thread:$0]  %s6, 1024, %s66, [#allocation10], 64, 64, 4
    $region29: #{tpu_custom_call.1} parent=1 // pred_fallthru
      _
    // Predicated region
    $region30: #{tpu_custom_call.1} parent=1 // pred_check
      _
    $region31: #{tpu_custom_call.1} parent=1 // pred_check_branch
      %73 = sbr.rel (0) target = $region33
    $region32: #{tpu_custom_call.1} parent=1 // pred_region
      _
    $region33: #{tpu_custom_call.1} parent=1 // pred_fallthru
      _
    // Predicated region
    $region34: #{tpu_custom_call.1} parent=1 // pred_check
      _
    $region35: #{tpu_custom_call.1} parent=1 // pred_check_branch
      %75 = sbr.rel (0) target = $region37
    $region36: #{tpu_custom_call.1} parent=1 // pred_region
      %76 = dma.done [#allocation4], 128
    $region37: #{tpu_custom_call.1} parent=1 // pred_fallthru
      _
    // Predicated region
    $region38: #{tpu_custom_call.1} parent=1 // pred_check
      _
    $region39: #{tpu_custom_call.1} parent=1 // pred_check_branch
      %78 = sbr.rel (0) target = $region41
    $region40: #{tpu_custom_call.1} parent=1 // pred_region
      %79 = dma.done [#allocation7], 1024
    $region41: #{tpu_custom_call.1} parent=1 // pred_fallthru
      _
    // Predicated region
    $region42: #{tpu_custom_call.1} parent=1 // pred_check
      _
    $region43: #{tpu_custom_call.1} parent=1 // pred_check_branch
      %81 = sbr.rel (0) target = $region45
    $region44: #{tpu_custom_call.1} parent=1 // pred_region
      %82 = dma.done [#allocation7], 1024
    $region45: #{tpu_custom_call.1} parent=1 // pred_fallthru
      _
    // Predicated region
    $region46: #{tpu_custom_call.1} parent=1 // pred_check
      _
    $region47: #{tpu_custom_call.1} parent=1 // pred_check_branch
      %84 = sbr.rel (0) target = $region49
    $region48: #{tpu_custom_call.1} parent=1 // pred_region
      %85 = dma.done [#allocation10], 1024
    $region49: #{tpu_custom_call.1} parent=1 // pred_fallthru
      _
    %v87 = vld [vmem:[#allocation3] sm:$0xf]
    %v88 = vld [vmem:[#allocation3 + $0x4] sm:$0xf]
    %v89 = vld [vmem:[#allocation6] sm:$0xf]
    %v90 = vld [vmem:[#allocation6 + $0x4] sm:$0xf]
    %v91 = vld [vmem:[#allocation6 + $0x8] sm:$0xf]
    %v92 = vld [vmem:[#allocation6 + $0xc] sm:$0xf]
    %v93 = vld [vmem:[#allocation6 + $0x10] sm:$0xf]
    %v94 = vld [vmem:[#allocation6 + $0x14] sm:$0xf]
    %v95 = vld [vmem:[#allocation6 + $0x18] sm:$0xf]
    %v96 = vld [vmem:[#allocation6 + $0x1c] sm:$0xf]
    %v97 = vld [vmem:[#allocation6 + $0x20] sm:$0xf]
    %v98 = vld [vmem:[#allocation6 + $0x24] sm:$0xf]
    %v99 = vld [vmem:[#allocation6 + $0x28] sm:$0xf]
    %v100 = vld [vmem:[#allocation6 + $0x2c] sm:$0xf]
    %v101 = vld [vmem:[#allocation6 + $0x30] sm:$0xf]
    %v102 = vld [vmem:[#allocation6 + $0x34] sm:$0xf]
    %v103 = vld [vmem:[#allocation6 + $0x38] sm:$0xf]
    %v104 = vld [vmem:[#allocation6 + $0x3c] sm:$0xf]
    %v105 = vld [vmem:[%s3] sm:$0x1]
    %v107 = vlaneseq
    %v108 = vshrl.u32 %v107, 7
    %v109 = vsub.s32 0, %v108
    %v110 = vrot.slane %v105, %v109
    %v114 = vunpack.c.l.b16 %v87
    %v115 = vunpack.c.l.b16 %v88
    %v116 = vpack.c.b16 %v115, %v114
    %v134 = vunpack.c.l.b16 %v89
    %v135 = vunpack.c.l.b16 %v90
    %v136 = vunpack.c.l.b16 %v91
    %v137 = vunpack.c.l.b16 %v92
    %v138 = vunpack.c.l.b16 %v93
    %v139 = vunpack.c.l.b16 %v94
    %v140 = vunpack.c.l.b16 %v95
    %v141 = vunpack.c.l.b16 %v96
    %v142 = vunpack.c.l.b16 %v97
    %v143 = vunpack.c.l.b16 %v98
    %v144 = vunpack.c.l.b16 %v99
    %v145 = vunpack.c.l.b16 %v100
    %v146 = vunpack.c.l.b16 %v101
    %v147 = vunpack.c.l.b16 %v102
    %v148 = vunpack.c.l.b16 %v103
    %v149 = vunpack.c.l.b16 %v104
    %v150 = vpack.c.b16 %v135, %v134
    %v151 = vpack.c.b16 %v137, %v136
    %v152 = vpack.c.b16 %v139, %v138
    %v153 = vpack.c.b16 %v141, %v140
    %v154 = vpack.c.b16 %v143, %v142
    %v155 = vpack.c.b16 %v145, %v144
    %v156 = vpack.c.b16 %v147, %v146
    %v157 = vpack.c.b16 %v149, %v148
    %166 = vmatprep.subr.bf16.mxu0 0
    %167 = vmatpush1.bf16.msra.mxu0 %v150
    %168 = vmatprep.subr.bf16.mxu0 0
    %169 = vmatpush1.bf16.msra.mxu0 %v151
    %170 = vmatprep.subr.bf16.mxu0 0
    %171 = vmatpush1.bf16.msra.mxu0 %v152
    %172 = vmatprep.subr.bf16.mxu0 0
    %173 = vmatpush1.bf16.msra.mxu0 %v153
    %174 = vmatprep.subr.bf16.mxu0 0
    %175 = vmatpush1.bf16.msra.mxu0 %v154
    %176 = vmatprep.subr.bf16.mxu0 0
    %177 = vmatpush1.bf16.msra.mxu0 %v155
    %178 = vmatprep.subr.bf16.mxu0 0
    %179 = vmatpush1.bf16.msra.mxu0 %v156
    %180 = vmatprep.subr.bf16.mxu0 0
    %181 = vmatpush1.bf16.msra.mxu0 %v157
    %182 = vmatprep.subr.bf16.mxu0 0
    %183 = vmatpush1.bf16.msra.mxu0 0
    %184 = vmatprep.subr.bf16.mxu0 0
    %185 = vmatpush1.bf16.msra.mxu0 0
    %186 = vmatprep.subr.bf16.mxu0 0
    %187 = vmatpush1.bf16.msra.mxu0 0
    %188 = vmatprep.subr.bf16.mxu0 0
    %189 = vmatpush1.bf16.msra.mxu0 0
    %190 = vmatprep.subr.bf16.mxu0 0
    %191 = vmatpush1.bf16.msra.mxu0 0
    %192 = vmatprep.subr.bf16.mxu0 0
    %193 = vmatpush1.bf16.msra.mxu0 0
    %194 = vmatprep.subr.bf16.mxu0 0
    %195 = vmatpush1.bf16.msra.mxu0 0
    %196 = vmatprep.subr.bf16.mxu0 0
    %197 = vmatpush1.bf16.msra.mxu0 0
    %198 = vmatprep.mubr.bf16.mxu0 0
    %199 = vmatmul.mubr.bf16.gmra.mrb[0].mxu0 %v116
    %v200 = vpop.f32.mrb[0].mxu0
    %v201 = vadd.f32 %v110, %v200
    %v202 = vpop.f32.mrb[0].mxu0
    %v203 = vpop.f32.mrb[0].mxu0
    %v204 = vadd.f32 %v110, %v203
    %v205 = vpop.f32.mrb[0].mxu0
    %206 = vdwg.mxu0
    %v207 = vmax.f32 %v201, 0.0
    %v208 = vmax.f32 %v204, 0.0
    %v209 = vpack.c.bf16 %v208, %v207
    %v210 = vld [vmem:[#allocation8] sm:$0xf]
    %v211 = vld [vmem:[#allocation8 + $0x4] sm:$0xf]
    %v212 = vld [vmem:[#allocation8 + $0x8] sm:$0xf]
    %v213 = vld [vmem:[#allocation8 + $0xc] sm:$0xf]
    %v214 = vld [vmem:[#allocation8 + $0x10] sm:$0xf]
    %v215 = vld [vmem:[#allocation8 + $0x14] sm:$0xf]
    %v216 = vld [vmem:[#allocation8 + $0x18] sm:$0xf]
    %v217 = vld [vmem:[#allocation8 + $0x1c] sm:$0xf]
    %v218 = vld [vmem:[#allocation8 + $0x20] sm:$0xf]
    %v219 = vld [vmem:[#allocation8 + $0x24] sm:$0xf]
    %v220 = vld [vmem:[#allocation8 + $0x28] sm:$0xf]
    %v221 = vld [vmem:[#allocation8 + $0x2c] sm:$0xf]
    %v222 = vld [vmem:[#allocation8 + $0x30] sm:$0xf]
    %v223 = vld [vmem:[#allocation8 + $0x34] sm:$0xf]
    %v224 = vld [vmem:[#allocation8 + $0x38] sm:$0xf]
    %v225 = vld [vmem:[#allocation8 + $0x3c] sm:$0xf]
    %v226 = vld [vmem:[%s5] sm:$0x1]
    %v228 = vlaneseq
    %v229 = vshrl.u32 %v228, 7
    %v230 = vsub.s32 0, %v229
    %v231 = vrot.slane %v226, %v230
    %v249 = vunpack.c.l.b16 %v210
    %v250 = vunpack.c.l.b16 %v211
    %v251 = vunpack.c.l.b16 %v212
    %v252 = vunpack.c.l.b16 %v213
    %v253 = vunpack.c.l.b16 %v214
    %v254 = vunpack.c.l.b16 %v215
    %v255 = vunpack.c.l.b16 %v216
    %v256 = vunpack.c.l.b16 %v217
    %v257 = vunpack.c.l.b16 %v218
    %v258 = vunpack.c.l.b16 %v219
    %v259 = vunpack.c.l.b16 %v220
    %v260 = vunpack.c.l.b16 %v221
    %v261 = vunpack.c.l.b16 %v222
    %v262 = vunpack.c.l.b16 %v223
    %v263 = vunpack.c.l.b16 %v224
    %v264 = vunpack.c.l.b16 %v225
    %v265 = vpack.c.b16 %v250, %v249
    %v266 = vpack.c.b16 %v252, %v251
    %v267 = vpack.c.b16 %v254, %v253
    %v268 = vpack.c.b16 %v256, %v255
    %v269 = vpack.c.b16 %v258, %v257
    %v270 = vpack.c.b16 %v260, %v259
    %v271 = vpack.c.b16 %v262, %v261
    %v272 = vpack.c.b16 %v264, %v263
    %281 = vmatprep.subr.bf16.mxu0 0
    %282 = vmatpush1.bf16.msra.mxu0 %v265
    %283 = vmatprep.subr.bf16.mxu0 0
    %284 = vmatpush1.bf16.msra.mxu0 %v266
    %285 = vmatprep.subr.bf16.mxu0 0
    %286 = vmatpush1.bf16.msra.mxu0 %v267
    %287 = vmatprep.subr.bf16.mxu0 0
    %288 = vmatpush1.bf16.msra.mxu0 %v268
    %289 = vmatprep.subr.bf16.mxu0 0
    %290 = vmatpush1.bf16.msra.mxu0 %v269
    %291 = vmatprep.subr.bf16.mxu0 0
    %292 = vmatpush1.bf16.msra.mxu0 %v270
    %293 = vmatprep.subr.bf16.mxu0 0
    %294 = vmatpush1.bf16.msra.mxu0 %v271
    %295 = vmatprep.subr.bf16.mxu0 0
    %296 = vmatpush1.bf16.msra.mxu0 %v272
    %297 = vmatprep.subr.bf16.mxu0 0
    %298 = vmatpush1.bf16.msra.mxu0 0
    %299 = vmatprep.subr.bf16.mxu0 0
    %300 = vmatpush1.bf16.msra.mxu0 0
    %301 = vmatprep.subr.bf16.mxu0 0
    %302 = vmatpush1.bf16.msra.mxu0 0
    %303 = vmatprep.subr.bf16.mxu0 0
    %304 = vmatpush1.bf16.msra.mxu0 0
    %305 = vmatprep.subr.bf16.mxu0 0
    %306 = vmatpush1.bf16.msra.mxu0 0
    %307 = vmatprep.subr.bf16.mxu0 0
    %308 = vmatpush1.bf16.msra.mxu0 0
    %309 = vmatprep.subr.bf16.mxu0 0
    %310 = vmatpush1.bf16.msra.mxu0 0
    %311 = vmatprep.subr.bf16.mxu0 0
    %312 = vmatpush1.bf16.msra.mxu0 0
    %313 = vmatprep.mubr.bf16.mxu0 0
    %314 = vmatmul.mubr.bf16.gmra.mrb[0].mxu0 %v209
    %v315 = vpop.f32.mrb[0].mxu0
    %v316 = vadd.f32 %v231, %v315
    %v317 = vpop.f32.mrb[0].mxu0
    %v318 = vpop.f32.mrb[0].mxu0
    %v319 = vadd.f32 %v231, %v318
    %v320 = vpop.f32.mrb[0].mxu0
    %321 = vdwg.mxu0
    %v322 = vmax.f32 %v316, 0.0
    %v323 = vmax.f32 %v319, 0.0
    %v324 = vpack.c.bf16 %v323, %v322
    %v325 = vld [vmem:[#allocation9] sm:$0xf]
    %v326 = vld [vmem:[#allocation9 + $0x4] sm:$0xf]
    %v327 = vld [vmem:[#allocation9 + $0x8] sm:$0xf]
    %v328 = vld [vmem:[#allocation9 + $0xc] sm:$0xf]
    %v329 = vld [vmem:[#allocation9 + $0x10] sm:$0xf]
    %v330 = vld [vmem:[#allocation9 + $0x14] sm:$0xf]
    %v331 = vld [vmem:[#allocation9 + $0x18] sm:$0xf]
    %v332 = vld [vmem:[#allocation9 + $0x1c] sm:$0xf]
    %v333 = vld [vmem:[#allocation9 + $0x20] sm:$0xf]
    %v334 = vld [vmem:[#allocation9 + $0x24] sm:$0xf]
    %v335 = vld [vmem:[#allocation9 + $0x28] sm:$0xf]
    %v336 = vld [vmem:[#allocation9 + $0x2c] sm:$0xf]
    %v337 = vld [vmem:[#allocation9 + $0x30] sm:$0xf]
    %v338 = vld [vmem:[#allocation9 + $0x34] sm:$0xf]
    %v339 = vld [vmem:[#allocation9 + $0x38] sm:$0xf]
    %v340 = vld [vmem:[#allocation9 + $0x3c] sm:$0xf]
    %v341 = vld [vmem:[%s7] sm:$0x1]
    %v343 = vlaneseq
    %v344 = vshrl.u32 %v343, 7
    %v345 = vsub.s32 0, %v344
    %v346 = vrot.slane %v341, %v345
    %v364 = vunpack.c.l.b16 %v325
    %v365 = vunpack.c.l.b16 %v326
    %v366 = vunpack.c.l.b16 %v327
    %v367 = vunpack.c.l.b16 %v328
    %v368 = vunpack.c.l.b16 %v329
    %v369 = vunpack.c.l.b16 %v330
    %v370 = vunpack.c.l.b16 %v331
    %v371 = vunpack.c.l.b16 %v332
    %v372 = vunpack.c.l.b16 %v333
    %v373 = vunpack.c.l.b16 %v334
    %v374 = vunpack.c.l.b16 %v335
    %v375 = vunpack.c.l.b16 %v336
    %v376 = vunpack.c.l.b16 %v337
    %v377 = vunpack.c.l.b16 %v338
    %v378 = vunpack.c.l.b16 %v339
    %v379 = vunpack.c.l.b16 %v340
    %v380 = vpack.c.b16 %v365, %v364
    %v381 = vpack.c.b16 %v367, %v366
    %v382 = vpack.c.b16 %v369, %v368
    %v383 = vpack.c.b16 %v371, %v370
    %v384 = vpack.c.b16 %v373, %v372
    %v385 = vpack.c.b16 %v375, %v374
    %v386 = vpack.c.b16 %v377, %v376
    %v387 = vpack.c.b16 %v379, %v378
    %396 = vmatprep.subr.bf16.mxu0 0
    %397 = vmatpush1.bf16.msra.mxu0 %v380
    %398 = vmatprep.subr.bf16.mxu0 0
    %399 = vmatpush1.bf16.msra.mxu0 %v381
    %400 = vmatprep.subr.bf16.mxu0 0
    %401 = vmatpush1.bf16.msra.mxu0 %v382
    %402 = vmatprep.subr.bf16.mxu0 0
    %403 = vmatpush1.bf16.msra.mxu0 %v383
    %404 = vmatprep.subr.bf16.mxu0 0
    %405 = vmatpush1.bf16.msra.mxu0 %v384
    %406 = vmatprep.subr.bf16.mxu0 0
    %407 = vmatpush1.bf16.msra.mxu0 %v385
    %408 = vmatprep.subr.bf16.mxu0 0
    %409 = vmatpush1.bf16.msra.mxu0 %v386
    %410 = vmatprep.subr.bf16.mxu0 0
    %411 = vmatpush1.bf16.msra.mxu0 %v387
    %412 = vmatprep.subr.bf16.mxu0 0
    %413 = vmatpush1.bf16.msra.mxu0 0
    %414 = vmatprep.subr.bf16.mxu0 0
    %415 = vmatpush1.bf16.msra.mxu0 0
    %416 = vmatprep.subr.bf16.mxu0 0
    %417 = vmatpush1.bf16.msra.mxu0 0
    %418 = vmatprep.subr.bf16.mxu0 0
    %419 = vmatpush1.bf16.msra.mxu0 0
    %420 = vmatprep.subr.bf16.mxu0 0
    %421 = vmatpush1.bf16.msra.mxu0 0
    %422 = vmatprep.subr.bf16.mxu0 0
    %423 = vmatpush1.bf16.msra.mxu0 0
    %424 = vmatprep.subr.bf16.mxu0 0
    %425 = vmatpush1.bf16.msra.mxu0 0
    %426 = vmatprep.subr.bf16.mxu0 0
    %427 = vmatpush1.bf16.msra.mxu0 0
    %428 = vmatprep.mubr.bf16.mxu0 0
    %429 = vmatmul.mubr.bf16.gmra.mrb[0].mxu0 %v324
    %v430 = vpop.f32.mrb[0].mxu0
    %v431 = vadd.f32 %v346, %v430
    %v432 = vpop.f32.mrb[0].mxu0
    %v433 = vpop.f32.mrb[0].mxu0
    %v434 = vadd.f32 %v346, %v433
    %v435 = vpop.f32.mrb[0].mxu0
    %436 = vdwg.mxu0
    %v437 = vtanh.pop %v431
    %v438 = vtanh.pop %v434
    %s439 = sld [smem:[#allocation2]]
    %v440 = vstv %s439
    %v441 = vmul.f32 %v440, %v437
    %v442 = vmul.f32 %v440, %v438
    %443 = vst [vmem:[#allocation11] sm:$0xff] %v441
    %444 = vst [vmem:[#allocation11 + $0x8] sm:$0xff] %v442
    // Predicated region
    $region50: #{tpu_custom_call.1} parent=1 // pred_check
      _
    $region51: #{tpu_custom_call.1} parent=1 // pred_check_branch
      %446 = sbr.rel (0) target = $region53
    $region52: #{tpu_custom_call.1} parent=1 // pred_region
      %s448 = ssub.s32 256, 256
      %449 = vsyncadd [#allocation5], %s448
      %s450 = sshll.u32 [#allocation11], 4
      %s451 = int_to_ptr.vmem [resolvable:$true] %s450
      %456 = dma.vmem_to_hbm [thread:$0]  %s451, 256, %s8, [#allocation5], 128, 128, 8
    $region53: #{tpu_custom_call.1} parent=1 // pred_fallthru
      _
    // Predicated region
    $region54: #{tpu_custom_call.1} parent=1 // pred_check
      _
    $region55: #{tpu_custom_call.1} parent=1 // pred_check_branch
      %458 = sbr.rel (0) target = $region57
    $region56: #{tpu_custom_call.1} parent=1 // pred_region
      %459 = dma.done [#allocation5], 256
    $region57: #{tpu_custom_call.1} parent=1 // pred_fallthru
      _
    %460 = vsyncpa [#allocation4], 1
    %461 = vsyncpa [#allocation7], 1
    %462 = vsyncpa [#allocation10], 1
    %463 = vsyncpa [#allocation5], 1

// kernel: tpu_custom_call.1
$region0: #{tpu_custom_call.1}
  #allocation0 [shape = 'u32[]', space=smem, size = 0x4, offset = 0x4, fixed_abs, tag = 'smem constant byte address 0x4 - core index']
  #allocation1 [shape = 'u32[144,128]{1,0:T(1,128)}', space=vmem, size = 0x12000, scoped, tag = 'internal scratch']
  #allocation2 [shape = 'f32[1,1]{1,0:T(1,128)S(6)}', space=smem, size = 0x200, scoped, tag = 'scoped memory for tpu_custom_call.1']
  %s0 = inlined_call_operand.<no memory space> [shape: f32[1,1], index: 0, kind: input, shape index: {}]
  %s1 = inlined_call_operand.hbm [shape: bf16[16,128], index: 1, kind: input, shape index: {}]
  %s2 = inlined_call_operand.hbm [shape: bf16[128,128], index: 2, kind: input, shape index: {}]
  %s3 = inlined_call_operand.vmem [shape: f32[1,128], index: 3, kind: input, shape index: {}]
  %s4 = inlined_call_operand.hbm [shape: bf16[128,128], index: 4, kind: input, shape index: {}]
  %s5 = inlined_call_operand.vmem [shape: f32[1,128], index: 5, kind: input, shape index: {}]
  %s6 = inlined_call_operand.hbm [shape: bf16[128,128], index: 6, kind: input, shape index: {}]
  %s7 = inlined_call_operand.vmem [shape: f32[1,128], index: 7, kind: input, shape index: {}]
  %s8 = inlined_call_operand.hbm [shape: f32[16,128], index: 8, kind: output, shape index: {}]
  %s9 = sld [smem:[#allocation0]]
  $region58: #{tpu_custom_call.1} parent=0
    _
  %s11 = ssub.s32 1, %s9
  %s12 = scalar_select 0, %s11, %s9
  %13 = sst [smem:[#allocation2]] %s0
  $region1: #{tpu_custom_call.1} parent=0
    #allocation3 [shape = 'u8[4096]{0}', space=vmem, size = 0x1000, scoped, tag = 'input window, operand 1, single buffered']
    #allocation4 [shape = 's32[1]{0}', space=sflag, size = 0x4, scoped, tag = 'scoped memory for tpu_custom_call.1']
    #allocation5 [shape = 's32[1]{0}', space=sflag, size = 0x4, scoped, tag = 'scoped memory for tpu_custom_call.1']
    #allocation6 [shape = 'u8[32768]{0}', space=vmem, size = 0x8000, scoped, tag = 'input window, operand 2, single buffered']
    #allocation7 [shape = 's32[1]{0}', space=sflag, size = 0x4, scoped, tag = 'scoped memory for tpu_custom_call.1']
    #allocation8 [shape = 'u8[32768]{0}', space=vmem, size = 0x8000, scoped, tag = 'input window, operand 4, single buffered']
    #allocation9 [shape = 'u8[32768]{0}', space=vmem, size = 0x8000, scoped, tag = 'input window, operand 6, single buffered']
    #allocation10 [shape = 's32[1]{0}', space=sflag, size = 0x4, scoped, tag = 'scoped memory for tpu_custom_call.1']
    #allocation11 [shape = 'u8[8192]{0}', space=vmem, size = 0x2000, scoped, tag = 'output window, operand 0, single buffered']
    %14 = vsyncpa [#allocation4], 0
    %15 = vsyncpa [#allocation7], 0
    %16 = vsyncpa [#allocation10], 0
    %17 = vsyncpa [#allocation5], 0
    // Predicated region
    $region2: #{tpu_custom_call.1} parent=1 // pred_check
      _
    $region3: #{tpu_custom_call.1} parent=1 // pred_check_branch
      %19 = sbr.rel (0) target = $region5
    $region4: #{tpu_custom_call.1} parent=1 // pred_region
      _
    $region5: #{tpu_custom_call.1} parent=1 // pred_fallthru
      _
    // Predicated region
    $region6: #{tpu_custom_call.1} parent=1 // pred_check
      _
    $region7: #{tpu_custom_call.1} parent=1 // pred_check_branch
      %21 = sbr.rel (0) target = $region9
    $region8: #{tpu_custom_call.1} parent=1 // pred_region
      %s23 = ssub.s32 128, 128
      %24 = vsyncadd [#allocation4], %s23
      %s25 = sshll.u32 [#allocation3], 4
      %s26 = int_to_ptr.vmem [resolvable:$true] %s25
      %31 = dma.hbm_to_vmem [thread:$0]  %s1, 128, %s26, [#allocation4], 64, 64, 4
    $region9: #{tpu_custom_call.1} parent=1 // pred_fallthru
      _
    // Predicated region
    $region10: #{tpu_custom_call.1} parent=1 // pred_check
      _
    $region11: #{tpu_custom_call.1} parent=1 // pred_check_branch
      %33 = sbr.rel (0) target = $region13
    $region12: #{tpu_custom_call.1} parent=1 // pred_region
      %s35 = ssub.s32 1024, 1024
      %36 = vsyncadd [#allocation7], %s35
      %s37 = sshll.u32 [#allocation6], 4
      %s38 = int_to_ptr.vmem [resolvable:$true] %s37
      %43 = dma.hbm_to_vmem [thread:$0]  %s2, 1024, %s38, [#allocation7], 64, 64, 4
    $region13: #{tpu_custom_call.1} parent=1 // pred_fallthru
      _
    // Predicated region
    $region14: #{tpu_custom_call.1} parent=1 // pred_check
      _
    $region15: #{tpu_custom_call.1} parent=1 // pred_check_branch
      %45 = sbr.rel (0) target = $region17
    $region16: #{tpu_custom_call.1} parent=1 // pred_region
      _
    $region17: #{tpu_custom_call.1} parent=1 // pred_fallthru
      _
    // Predicated region
    $region18: #{tpu_custom_call.1} parent=1 // pred_check
      _
    $region19: #{tpu_custom_call.1} parent=1 // pred_check_branch
      %47 = sbr.rel (0) target = $region21
    $region20: #{tpu_custom_call.1} parent=1 // pred_region
      %s49 = ssub.s32 1024, 1024
      %50 = vsyncadd [#allocation7], %s49
      %s51 = sshll.u32 [#allocation8], 4
      %s52 = int_to_ptr.vmem [resolvable:$true] %s51
      %57 = dma.hbm_to_vmem [thread:$0]  %s4, 1024, %s52, [#allocation7], 64, 64, 4
    $region21: #{tpu_custom_call.1} parent=1 // pred_fallthru
      _
    // Predicated region
    $region22: #{tpu_custom_call.1} parent=1 // pred_check
      _
    $region23: #{tpu_custom_call.1} parent=1 // pred_check_branch
      %59 = sbr.rel (0) target = $region25
    $region24: #{tpu_custom_call.1} parent=1 // pred_region
      _
    $region25: #{tpu_custom_call.1} parent=1 // pred_fallthru
      _
    // Predicated region
    $region26: #{tpu_custom_call.1} parent=1 // pred_check
      _
    $region27: #{tpu_custom_call.1} parent=1 // pred_check_branch
      %61 = sbr.rel (0) target = $region29
    $region28: #{tpu_custom_call.1} parent=1 // pred_region
      %s63 = ssub.s32 1024, 1024
      %64 = vsyncadd [#allocation10], %s63
      %s65 = sshll.u32 [#allocation9], 4
      %s66 = int_to_ptr.vmem [resolvable:$true] %s65
      %71 = dma.hbm_to_vmem [thread:$0]  %s6, 1024, %s66, [#allocation10], 64, 64, 4
    $region29: #{tpu_custom_call.1} parent=1 // pred_fallthru
      _
    // Predicated region
    $region30: #{tpu_custom_call.1} parent=1 // pred_check
      _
    $region31: #{tpu_custom_call.1} parent=1 // pred_check_branch
      %73 = sbr.rel (0) target = $region33
    $region32: #{tpu_custom_call.1} parent=1 // pred_region
      _
    $region33: #{tpu_custom_call.1} parent=1 // pred_fallthru
      _
    // Predicated region
    $region34: #{tpu_custom_call.1} parent=1 // pred_check
      _
    $region35: #{tpu_custom_call.1} parent=1 // pred_check_branch
      %75 = sbr.rel (0) target = $region37
    $region36: #{tpu_custom_call.1} parent=1 // pred_region
      %76 = dma.done [#allocation4], 128
    $region37: #{tpu_custom_call.1} parent=1 // pred_fallthru
      _
    // Predicated region
    $region38: #{tpu_custom_call.1} parent=1 // pred_check
      _
    $region39: #{tpu_custom_call.1} parent=1 // pred_check_branch
      %78 = sbr.rel (0) target = $region41
    $region40: #{tpu_custom_call.1} parent=1 // pred_region
      %79 = dma.done [#allocation7], 1024
    $region41: #{tpu_custom_call.1} parent=1 // pred_fallthru
      _
    // Predicated region
    $region42: #{tpu_custom_call.1} parent=1 // pred_check
      _
    $region43: #{tpu_custom_call.1} parent=1 // pred_check_branch
      %81 = sbr.rel (0) target = $region45
    $region44: #{tpu_custom_call.1} parent=1 // pred_region
      %82 = dma.done [#allocation7], 1024
    $region45: #{tpu_custom_call.1} parent=1 // pred_fallthru
      _
    // Predicated region
    $region46: #{tpu_custom_call.1} parent=1 // pred_check
      _
    $region47: #{tpu_custom_call.1} parent=1 // pred_check_branch
      %84 = sbr.rel (0) target = $region49
    $region48: #{tpu_custom_call.1} parent=1 // pred_region
      %85 = dma.done [#allocation10], 1024
    $region49: #{tpu_custom_call.1} parent=1 // pred_fallthru
      _
    %v87 = vld [vmem:[#allocation3] sm:$0xf]
    %v88 = vld [vmem:[#allocation3 + $0x4] sm:$0xf]
    %v89 = vld [vmem:[#allocation6] sm:$0xf]
    %v90 = vld [vmem:[#allocation6 + $0x4] sm:$0xf]
    %v91 = vld [vmem:[#allocation6 + $0x8] sm:$0xf]
    %v92 = vld [vmem:[#allocation6 + $0xc] sm:$0xf]
    %v93 = vld [vmem:[#allocation6 + $0x10] sm:$0xf]
    %v94 = vld [vmem:[#allocation6 + $0x14] sm:$0xf]
    %v95 = vld [vmem:[#allocation6 + $0x18] sm:$0xf]
    %v96 = vld [vmem:[#allocation6 + $0x1c] sm:$0xf]
    %v97 = vld [vmem:[#allocation6 + $0x20] sm:$0xf]
    %v98 = vld [vmem:[#allocation6 + $0x24] sm:$0xf]
    %v99 = vld [vmem:[#allocation6 + $0x28] sm:$0xf]
    %v100 = vld [vmem:[#allocation6 + $0x2c] sm:$0xf]
    %v101 = vld [vmem:[#allocation6 + $0x30] sm:$0xf]
    %v102 = vld [vmem:[#allocation6 + $0x34] sm:$0xf]
    %v103 = vld [vmem:[#allocation6 + $0x38] sm:$0xf]
    %v104 = vld [vmem:[#allocation6 + $0x3c] sm:$0xf]
    %v105 = vld [vmem:[%s3] sm:$0x1]
    %v107 = vlaneseq
    %v108 = vshrl.u32 %v107, 7
    %v109 = vsub.s32 0, %v108
    %v110 = vrot.slane %v105, %v109
    %v114 = vunpack.c.l.b16 %v87
    %v115 = vunpack.c.l.b16 %v88
    %v116 = vpack.c.b16 %v115, %v114
    %v134 = vunpack.c.l.b16 %v89
    %v135 = vunpack.c.l.b16 %v90
    %v136 = vunpack.c.l.b16 %v91
    %v137 = vunpack.c.l.b16 %v92
    %v138 = vunpack.c.l.b16 %v93
    %v139 = vunpack.c.l.b16 %v94
    %v140 = vunpack.c.l.b16 %v95
    %v141 = vunpack.c.l.b16 %v96
    %v142 = vunpack.c.l.b16 %v97
    %v143 = vunpack.c.l.b16 %v98
    %v144 = vunpack.c.l.b16 %v99
    %v145 = vunpack.c.l.b16 %v100
    %v146 = vunpack.c.l.b16 %v101
    %v147 = vunpack.c.l.b16 %v102
    %v148 = vunpack.c.l.b16 %v103
    %v149 = vunpack.c.l.b16 %v104
    %v150 = vpack.c.b16 %v135, %v134
    %v151 = vpack.c.b16 %v137, %v136
    %v152 = vpack.c.b16 %v139, %v138
    %v153 = vpack.c.b16 %v141, %v140
    %v154 = vpack.c.b16 %v143, %v142
    %v155 = vpack.c.b16 %v145, %v144
    %v156 = vpack.c.b16 %v147, %v146
    %v157 = vpack.c.b16 %v149, %v148
    %166 = vmatprep.subr.bf16.mxu0 0
    %167 = vmatpush1.bf16.msra.mxu0 %v150
    %168 = vmatprep.subr.bf16.mxu0 0
    %169 = vmatpush1.bf16.msra.mxu0 %v151
    %170 = vmatprep.subr.bf16.mxu0 0
    %171 = vmatpush1.bf16.msra.mxu0 %v152
    %172 = vmatprep.subr.bf16.mxu0 0
    %173 = vmatpush1.bf16.msra.mxu0 %v153
    %174 = vmatprep.subr.bf16.mxu0 0
    %175 = vmatpush1.bf16.msra.mxu0 %v154
    %176 = vmatprep.subr.bf16.mxu0 0
    %177 = vmatpush1.bf16.msra.mxu0 %v155
    %178 = vmatprep.subr.bf16.mxu0 0
    %179 = vmatpush1.bf16.msra.mxu0 %v156
    %180 = vmatprep.subr.bf16.mxu0 0
    %181 = vmatpush1.bf16.msra.mxu0 %v157
    %182 = vmatprep.subr.bf16.mxu0 0
    %183 = vmatpush1.bf16.msra.mxu0 0
    %184 = vmatprep.subr.bf16.mxu0 0
    %185 = vmatpush1.bf16.msra.mxu0 0
    %186 = vmatprep.subr.bf16.mxu0 0
    %187 = vmatpush1.bf16.msra.mxu0 0
    %188 = vmatprep.subr.bf16.mxu0 0
    %189 = vmatpush1.bf16.msra.mxu0 0
    %190 = vmatprep.subr.bf16.mxu0 0
    %191 = vmatpush1.bf16.msra.mxu0 0
    %192 = vmatprep.subr.bf16.mxu0 0
    %193 = vmatpush1.bf16.msra.mxu0 0
    %194 = vmatprep.subr.bf16.mxu0 0
    %195 = vmatpush1.bf16.msra.mxu0 0
    %196 = vmatprep.subr.bf16.mxu0 0
    %197 = vmatpush1.bf16.msra.mxu0 0
    %198 = vmatprep.mubr.bf16.mxu0 0
    %199 = vmatmul.mubr.bf16.gmra.mrb[0].mxu0 %v116
    %v200 = vpop.f32.mrb[0].mxu0
    %v201 = vadd.f32 %v110, %v200
    %v202 = vpop.f32.mrb[0].mxu0
    %v203 = vpop.f32.mrb[0].mxu0
    %v204 = vadd.f32 %v110, %v203
    %v205 = vpop.f32.mrb[0].mxu0
    %206 = vdwg.mxu0
    %v207 = vmax.f32 %v201, 0.0
    %v208 = vmax.f32 %v204, 0.0
    %v209 = vpack.c.bf16 %v208, %v207
    %v210 = vld [vmem:[#allocation8] sm:$0xf]
    %v211 = vld [vmem:[#allocation8 + $0x4] sm:$0xf]
    %v212 = vld [vmem:[#allocation8 + $0x8] sm:$0xf]
    %v213 = vld [vmem:[#allocation8 + $0xc] sm:$0xf]
    %v214 = vld [vmem:[#allocation8 + $0x10] sm:$0xf]
    %v215 = vld [vmem:[#allocation8 + $0x14] sm:$0xf]
    %v216 = vld [vmem:[#allocation8 + $0x18] sm:$0xf]
    %v217 = vld [vmem:[#allocation8 + $0x1c] sm:$0xf]
    %v218 = vld [vmem:[#allocation8 + $0x20] sm:$0xf]
    %v219 = vld [vmem:[#allocation8 + $0x24] sm:$0xf]
    %v220 = vld [vmem:[#allocation8 + $0x28] sm:$0xf]
    %v221 = vld [vmem:[#allocation8 + $0x2c] sm:$0xf]
    %v222 = vld [vmem:[#allocation8 + $0x30] sm:$0xf]
    %v223 = vld [vmem:[#allocation8 + $0x34] sm:$0xf]
    %v224 = vld [vmem:[#allocation8 + $0x38] sm:$0xf]
    %v225 = vld [vmem:[#allocation8 + $0x3c] sm:$0xf]
    %v226 = vld [vmem:[%s5] sm:$0x1]
    %v228 = vlaneseq
    %v229 = vshrl.u32 %v228, 7
    %v230 = vsub.s32 0, %v229
    %v231 = vrot.slane %v226, %v230
    %v249 = vunpack.c.l.b16 %v210
    %v250 = vunpack.c.l.b16 %v211
    %v251 = vunpack.c.l.b16 %v212
    %v252 = vunpack.c.l.b16 %v213
    %v253 = vunpack.c.l.b16 %v214
    %v254 = vunpack.c.l.b16 %v215
    %v255 = vunpack.c.l.b16 %v216
    %v256 = vunpack.c.l.b16 %v217
    %v257 = vunpack.c.l.b16 %v218
    %v258 = vunpack.c.l.b16 %v219
    %v259 = vunpack.c.l.b16 %v220
    %v260 = vunpack.c.l.b16 %v221
    %v261 = vunpack.c.l.b16 %v222
    %v262 = vunpack.c.l.b16 %v223
    %v263 = vunpack.c.l.b16 %v224
    %v264 = vunpack.c.l.b16 %v225
    %v265 = vpack.c.b16 %v250, %v249
    %v266 = vpack.c.b16 %v252, %v251
    %v267 = vpack.c.b16 %v254, %v253
    %v268 = vpack.c.b16 %v256, %v255
    %v269 = vpack.c.b16 %v258, %v257
    %v270 = vpack.c.b16 %v260, %v259
    %v271 = vpack.c.b16 %v262, %v261
    %v272 = vpack.c.b16 %v264, %v263
    %281 = vmatprep.subr.bf16.mxu0 0
    %282 = vmatpush1.bf16.msra.mxu0 %v265
    %283 = vmatprep.subr.bf16.mxu0 0
    %284 = vmatpush1.bf16.msra.mxu0 %v266
    %285 = vmatprep.subr.bf16.mxu0 0
    %286 = vmatpush1.bf16.msra.mxu0 %v267
    %287 = vmatprep.subr.bf16.mxu0 0
    %288 = vmatpush1.bf16.msra.mxu0 %v268
    %289 = vmatprep.subr.bf16.mxu0 0
    %290 = vmatpush1.bf16.msra.mxu0 %v269
    %291 = vmatprep.subr.bf16.mxu0 0
    %292 = vmatpush1.bf16.msra.mxu0 %v270
    %293 = vmatprep.subr.bf16.mxu0 0
    %294 = vmatpush1.bf16.msra.mxu0 %v271
    %295 = vmatprep.subr.bf16.mxu0 0
    %296 = vmatpush1.bf16.msra.mxu0 %v272
    %297 = vmatprep.subr.bf16.mxu0 0
    %298 = vmatpush1.bf16.msra.mxu0 0
    %299 = vmatprep.subr.bf16.mxu0 0
    %300 = vmatpush1.bf16.msra.mxu0 0
    %301 = vmatprep.subr.bf16.mxu0 0
    %302 = vmatpush1.bf16.msra.mxu0 0
    %303 = vmatprep.subr.bf16.mxu0 0
    %304 = vmatpush1.bf16.msra.mxu0 0
    %305 = vmatprep.subr.bf16.mxu0 0
    %306 = vmatpush1.bf16.msra.mxu0 0
    %307 = vmatprep.subr.bf16.mxu0 0
    %308 = vmatpush1.bf16.msra.mxu0 0
    %309 = vmatprep.subr.bf16.mxu0 0
    %310 = vmatpush1.bf16.msra.mxu0 0
    %311 = vmatprep.subr.bf16.mxu0 0
    %312 = vmatpush1.bf16.msra.mxu0 0
    %313 = vmatprep.mubr.bf16.mxu0 0
    %314 = vmatmul.mubr.bf16.gmra.mrb[0].mxu0 %v209
    %v315 = vpop.f32.mrb[0].mxu0
    %v316 = vadd.f32 %v231, %v315
    %v317 = vpop.f32.mrb[0].mxu0
    %v318 = vpop.f32.mrb[0].mxu0
    %v319 = vadd.f32 %v231, %v318
    %v320 = vpop.f32.mrb[0].mxu0
    %321 = vdwg.mxu0
    %v322 = vmax.f32 %v316, 0.0
    %v323 = vmax.f32 %v319, 0.0
    %v324 = vpack.c.bf16 %v323, %v322
    %v325 = vld [vmem:[#allocation9] sm:$0xf]
    %v326 = vld [vmem:[#allocation9 + $0x4] sm:$0xf]
    %v327 = vld [vmem:[#allocation9 + $0x8] sm:$0xf]
    %v328 = vld [vmem:[#allocation9 + $0xc] sm:$0xf]
    %v329 = vld [vmem:[#allocation9 + $0x10] sm:$0xf]
    %v330 = vld [vmem:[#allocation9 + $0x14] sm:$0xf]
    %v331 = vld [vmem:[#allocation9 + $0x18] sm:$0xf]
    %v332 = vld [vmem:[#allocation9 + $0x1c] sm:$0xf]
    %v333 = vld [vmem:[#allocation9 + $0x20] sm:$0xf]
    %v334 = vld [vmem:[#allocation9 + $0x24] sm:$0xf]
    %v335 = vld [vmem:[#allocation9 + $0x28] sm:$0xf]
    %v336 = vld [vmem:[#allocation9 + $0x2c] sm:$0xf]
    %v337 = vld [vmem:[#allocation9 + $0x30] sm:$0xf]
    %v338 = vld [vmem:[#allocation9 + $0x34] sm:$0xf]
    %v339 = vld [vmem:[#allocation9 + $0x38] sm:$0xf]
    %v340 = vld [vmem:[#allocation9 + $0x3c] sm:$0xf]
    %v341 = vld [vmem:[%s7] sm:$0x1]
    %v343 = vlaneseq
    %v344 = vshrl.u32 %v343, 7
    %v345 = vsub.s32 0, %v344
    %v346 = vrot.slane %v341, %v345
    %v364 = vunpack.c.l.b16 %v325
    %v365 = vunpack.c.l.b16 %v326
    %v366 = vunpack.c.l.b16 %v327
    %v367 = vunpack.c.l.b16 %v328
    %v368 = vunpack.c.l.b16 %v329
    %v369 = vunpack.c.l.b16 %v330
    %v370 = vunpack.c.l.b16 %v331
    %v371 = vunpack.c.l.b16 %v332
    %v372 = vunpack.c.l.b16 %v333
    %v373 = vunpack.c.l.b16 %v334
    %v374 = vunpack.c.l.b16 %v335
    %v375 = vunpack.c.l.b16 %v336
    %v376 = vunpack.c.l.b16 %v337
    %v377 = vunpack.c.l.b16 %v338
    %v378 = vunpack.c.l.b16 %v339
    %v379 = vunpack.c.l.b16 %v340
    %v380 = vpack.c.b16 %v365, %v364
    %v381 = vpack.c.b16 %v367, %v366
    %v382 = vpack.c.b16 %v369, %v368
    %v383 = vpack.c.b16 %v371, %v370
    %v384 = vpack.c.b16 %v373, %v372
    %v385 = vpack.c.b16 %v375, %v374
    %v386 = vpack.c.b16 %v377, %v376
    %v387 = vpack.c.b16 %v379, %v378
    %396 = vmatprep.subr.bf16.mxu0 0
    %397 = vmatpush1.bf16.msra.mxu0 %v380
    %398 = vmatprep.subr.bf16.mxu0 0
    %399 = vmatpush1.bf16.msra.mxu0 %v381
    %400 = vmatprep.subr.bf16.mxu0 0
    %401 = vmatpush1.bf16.msra.mxu0 %v382
    %402 = vmatprep.subr.bf16.mxu0 0
    %403 = vmatpush1.bf16.msra.mxu0 %v383
    %404 = vmatprep.subr.bf16.mxu0 0
    %405 = vmatpush1.bf16.msra.mxu0 %v384
    %406 = vmatprep.subr.bf16.mxu0 0
    %407 = vmatpush1.bf16.msra.mxu0 %v385
    %408 = vmatprep.subr.bf16.mxu0 0
    %409 = vmatpush1.bf16.msra.mxu0 %v386
    %410 = vmatprep.subr.bf16.mxu0 0
    %411 = vmatpush1.bf16.msra.mxu0 %v387
    %412 = vmatprep.subr.bf16.mxu0 0
    %413 = vmatpush1.bf16.msra.mxu0 0
    %414 = vmatprep.subr.bf16.mxu0 0
    %415 = vmatpush1.bf16.msra.mxu0 0
    %416 = vmatprep.subr.bf16.mxu0 0
    %417 = vmatpush1.bf16.msra.mxu0 0
    %418 = vmatprep.subr.bf16.mxu0 0
    %419 = vmatpush1.bf16.msra.mxu0 0
    %420 = vmatprep.subr.bf16.mxu0 0
    %421 = vmatpush1.bf16.msra.mxu0 0
    %422 = vmatprep.subr.bf16.mxu0 0
    %423 = vmatpush1.bf16.msra.mxu0 0
    %424 = vmatprep.subr.bf16.mxu0 0
    %425 = vmatpush1.bf16.msra.mxu0 0
    %426 = vmatprep.subr.bf16.mxu0 0
    %427 = vmatpush1.bf16.msra.mxu0 0
    %428 = vmatprep.mubr.bf16.mxu0 0
    %429 = vmatmul.mubr.bf16.gmra.mrb[0].mxu0 %v324
    %v430 = vpop.f32.mrb[0].mxu0
    %v431 = vadd.f32 %v346, %v430
    %v432 = vpop.f32.mrb[0].mxu0
    %v433 = vpop.f32.mrb[0].mxu0
    %v434 = vadd.f32 %v346, %v433
    %v435 = vpop.f32.mrb[0].mxu0
    %436 = vdwg.mxu0
    %v437 = vtanh.pop %v431
    %v438 = vtanh.pop %v434
    %s439 = sld [smem:[#allocation2]]
    %v440 = vstv %s439
    %v441 = vmul.f32 %v440, %v437
    %v442 = vmul.f32 %v440, %v438
    %443 = vst [vmem:[#allocation11] sm:$0xff] %v441
    %444 = vst [vmem:[#allocation11 + $0x8] sm:$0xff] %v442
    // Predicated region
    $region50: #{tpu_custom_call.1} parent=1 // pred_check
      _
    $region51: #{tpu_custom_call.1} parent=1 // pred_check_branch
      %446 = sbr.rel (0) target = $region53
    $region52: #{tpu_custom_call.1} parent=1 // pred_region
      %s448 = ssub.s32 256, 256
      %449 = vsyncadd [#allocation5], %s448
      %s450 = sshll.u32 [#allocation11], 4
      %s451 = int_to_ptr.vmem [resolvable:$true] %s450
      %456 = dma.vmem_to_hbm [thread:$0]  %s451, 256, %s8, [#allocation5], 128, 128, 8
    $region53: #{tpu_custom_call.1} parent=1 // pred_fallthru
      _
    // Predicated region
    $region54: #{tpu_custom_call.1} parent=1 // pred_check
      _
    $region55: #{tpu_custom_call.1} parent=1 // pred_check_branch
      %458 = sbr.rel (0) target = $region57
    $region56: #{tpu_custom_call.1} parent=1 // pred_region
      %459 = dma.done [#allocation5], 256
    $region57: #{tpu_custom_call.1} parent=1 // pred_fallthru
      _
    %460 = vsyncpa [#allocation4], 1
    %461 = vsyncpa [#allocation7], 1
    %462 = vsyncpa [#allocation10], 1
    %463 = vsyncpa [#allocation5], 1

</llo_original>
